<compile_context>
chip_gen: v5e
topology: v5e:2x2
jax: 0.10.0
libtpu: 0.0.40
codegen_flags: <defaults>
</compile_context>

<pallas_src>
import functools

import jax
import jax.numpy as jnp
from jax.experimental import pallas as pl
from jax.experimental.pallas import tpu as pltpu

_LANES = 128
_SUBLANES = 8
# Row-tile alignment legal for every dtype packing (f32:8, bf16:16, int8/fp8:32).
_ROW_ALIGN = 32
# Target bytes per input block in NATIVE dtype.  4 MiB/input/block:
#   2 inputs x 2 pipeline buffers = 16 MiB VMEM of inputs, 8 MiB HBM per step
#   -> per-step fixed overhead ~12% on v7x (3.2 TB/s), ~6% v6e, ~4% v5e.
_DEFAULT_BLOCK_BYTES = 4 * 1024 * 1024
_MAX_CHAINS = 8  # independent accumulation chains inside the block reduce


def _round_up(x, m):
    return ((x + m - 1) // m) * m


# ---------------------------------------------------------------------------
# Kernel: per-block partial sum of |fake-real| (or squared diff).
# Emits one lane-dense (1, 8, 128) f32 slab per grid step (no cross-step deps).
# ---------------------------------------------------------------------------
def _fm_partial_kernel(fake_ref, real_ref, out_ref, *, loss_type, valid_rows,
                       num_chains, needs_mask):
    f = fake_ref[...].astype(jnp.float32)
    r = real_ref[...].astype(jnp.float32)
    diff = f - r
    contrib = jnp.abs(diff) if loss_type == "l1" else diff * diff
    tile = contrib.shape[0]

    if needs_mask:
        # Rows past the end of the (rows,128) view read unspecified data in the
        # last partial block: select 0 there (where, not multiply -- garbage may
        # be NaN/inf and NaN*0 would leak).
        row0 = pl.program_id(0) * tile
        row_idx = row0 + jax.lax.broadcasted_iota(jnp.int32, (tile, 1), 0)
        contrib = jnp.where(row_idx < valid_rows, contrib, 0.0)

    # Two-stage reduce with `num_chains` independent accumulators: cuts the vadd
    # dependence chain ~Kx so it stays hidden under the block DMA (v7x critical).
    groups = tile // (_SUBLANES * num_chains)
    partial = contrib.reshape(num_chains, groups, _SUBLANES, _LANES)
    partial = partial.sum(axis=1)   # K independent chains of VPU adds
    partial = partial.sum(axis=0)   # combine the K (8,128) partials
    out_ref[...] = partial.reshape(1, _SUBLANES, _LANES)


# ---------------------------------------------------------------------------
# One pallas_call per feature: unscaled partial sums of the elementwise loss.
# ---------------------------------------------------------------------------
def _feature_partial_sums(fake, real, *, loss_type, block_bytes):
    assert fake.shape == real.shape, "feature-matching requires matching shapes"
    n = fake.size
    assert n > 0

    itemsize = max(jnp.dtype(fake.dtype).itemsize, jnp.dtype(real.dtype).itemsize)
    target_rows = max(_ROW_ALIGN,
                      (block_bytes // (_LANES * itemsize)) // _ROW_ALIGN * _ROW_ALIGN)

    rows_exact = pl.cdiv(n, _LANES)
    if rows_exact > target_rows:
        # Multi-block: aligned tile, last block may be partial -> masked in-kernel.
        tile = target_rows
        rows = rows_exact
    else:
        # Single block equal to the (padded) full array: always a legal BlockSpec,
        # no masking needed (padding is matched zeros -> exact zero contribution).
        tile = _round_up(rows_exact, _SUBLANES)
        rows = tile

    padded_n = rows * _LANES
    f_flat = fake.reshape(-1)   # contiguous reshape: no HBM copy
    r_flat = real.reshape(-1)
    if padded_n != n:
        # Matched zero pad of BOTH tensors (|0-0| contributes 0).  Only taken when
        # feature.size is not already lane/sublane aligned.
        f_flat = jnp.pad(f_flat, (0, padded_n - n))
        r_flat = jnp.pad(r_flat, (0, padded_n - n))
    fake2d = f_flat.reshape(rows, _LANES)
    real2d = r_flat.reshape(rows, _LANES)

    num_blocks = pl.cdiv(rows, tile)
    needs_mask = (rows % tile) != 0

    num_chains = _MAX_CHAINS
    while num_chains > 1 and tile % (_SUBLANES * num_chains) != 0:
        num_chains //= 2
    assert tile % (_SUBLANES * num_chains) == 0

    kernel = functools.partial(_fm_partial_kernel, loss_type=loss_type,
                               valid_rows=rows, num_chains=num_chains,
                               needs_mask=needs_mask)

    # VMEM budget: 2 inputs x 2 pipeline buffers in native dtype + headroom for
    # f32 intermediates; capped well under v7x's 64 MiB physical VMEM.
    block_native = tile * _LANES * itemsize
    block_f32 = tile * _LANES * 4
    vmem_limit = int(min(56 * 1024 * 1024,
                         max(32 * 1024 * 1024,
                             4 * block_native + 2 * block_f32 + (2 << 20))))

    cost = pl.CostEstimate(
        flops=3 * fake2d.size,
        transcendentals=0,
        bytes_accessed=(fake2d.size * jnp.dtype(fake2d.dtype).itemsize
                        + real2d.size * jnp.dtype(real2d.dtype).itemsize
                        + num_blocks * _SUBLANES * _LANES * 4))

    partials = pl.pallas_call(
        kernel,
        out_shape=jax.ShapeDtypeStruct((num_blocks, _SUBLANES, _LANES), jnp.float32),
        grid_spec=pltpu.PrefetchScalarGridSpec(
            num_scalar_prefetch=0,
            grid=(num_blocks,),
            in_specs=[
                pl.BlockSpec((tile, _LANES), lambda i: (i, 0)),
                pl.BlockSpec((tile, _LANES), lambda i: (i, 0)),
            ],
            out_specs=pl.BlockSpec((1, _SUBLANES, _LANES), lambda i: (i, 0, 0)),
        ),
        compiler_params=pltpu.CompilerParams(
            # Independent per-block partials -> megacore-shardable on v7x.
            dimension_semantics=("parallel",),
            vmem_limit_bytes=vmem_limit,
        ),
        cost_estimate=cost,
    )(fake2d, real2d)
    return partials


def feature_matching_loss(fake_feats, real_feats, *, loss_type="l1",
                          block_bytes=_DEFAULT_BLOCK_BYTES):
    """(1/len(feats)) * sum_i mean(loss(fake_i, real_i)) as an f32 scalar."""
    assert loss_type in ("l1", "mse")
    assert len(fake_feats) == len(real_feats) and len(fake_feats) > 0
    num_feats = len(fake_feats)
    total = jnp.float32(0.0)
    for f, r in zip(fake_feats, real_feats):
        partials = _feature_partial_sums(f, r, loss_type=loss_type,
                                         block_bytes=block_bytes)
        # Tiny epilogue reduce (num_blocks x 8 x 128 f32); the per-feature mean is
        # folded here, so no scale stream is DMA'd into the kernel.
        total = total + jnp.sum(partials) * (1.0 / f.size)
    return total * (1.0 / num_feats)


# ---------------------------------------------------------------------------
# LossWrapper equivalent
# ---------------------------------------------------------------------------
class LossWrapper:
    def __init__(self, fem_loss_type="l1", fem_loss_weight=10.0):
        assert fem_loss_type in ("l1", "mse")
        self.loss_type = fem_loss_type
        self.weight = fem_loss_weight

    def __call__(self, data_dict, losses_dict, *, block_bytes=_DEFAULT_BLOCK_BYTES):
        real_feats_gen = data_dict["real_feats_gen"]
        fake_feats_gen = data_dict["fake_feats_gen"]
        # real_feats.detach() -> stop_gradient (no-op for the forward value).
        real_sg = [jax.lax.stop_gradient(r) for r in real_feats_gen]
        loss = feature_matching_loss(fake_feats_gen, real_sg,
                                     loss_type=self.loss_type,
                                     block_bytes=block_bytes)
        losses_dict["G_FM"] = loss * jnp.float32(self.weight)
        return losses_dict


if __name__ == "__main__":
    key = jax.random.PRNGKey(0)
    ks = jax.random.split(key, 6)

    # Small generator/discriminator features: two aligned scales plus one feature
    # whose size is NOT a multiple of 128 (exercises the matched-zero-pad path).
    real_feats_gen = [
        jax.random.normal(ks[0], (2, 4, 16, 16), dtype=jnp.float32),  # 2048 elems
        jax.random.normal(ks[1], (2, 8, 8, 8), dtype=jnp.float32),    # 1024 elems
        jax.random.normal(ks[2], (2, 3, 7, 9), dtype=jnp.float32),    #  378 elems
    ]
    fake_feats_gen = [
        jax.random.normal(ks[3], (2, 4, 16, 16), dtype=jnp.float32),
        jax.random.normal(ks[4], (2, 8, 8, 8), dtype=jnp.float32),
        jax.random.normal(ks[5], (2, 3, 7, 9), dtype=jnp.float32),
    ]
    data_dict = {"real_feats_gen": real_feats_gen, "fake_feats_gen": fake_feats_gen}

    def ref_loss(fakes, reals, kind, weight=10.0):
        acc = jnp.float32(0.0)
        for r, f in zip(reals, fakes):
            d = f.astype(jnp.float32) - r.astype(jnp.float32)
            acc = acc + (jnp.mean(jnp.abs(d)) if kind == "l1" else jnp.mean(d * d))
        return acc / len(reals) * weight

    # 1) Default l1 path (f32, single-block per feature).
    got = jax.block_until_ready(LossWrapper("l1", 10.0)(data_dict, {})["G_FM"])
    want = ref_loss(fake_feats_gen, real_feats_gen, "l1")
    assert jnp.allclose(got, want, rtol=1e-4, atol=1e-5), (got, want)

    # 2) mse path.
    got = jax.block_until_ready(LossWrapper("mse", 10.0)(data_dict, {})["G_FM"])
    want = ref_loss(fake_feats_gen, real_feats_gen, "mse")
    assert jnp.allclose(got, want, rtol=1e-4, atol=1e-5), (got, want)

    # 3) Native bf16 inputs (no host upcast; kernel casts to f32 per-vreg).
    real_bf = [r.astype(jnp.bfloat16) for r in real_feats_gen]
    fake_bf = [f.astype(jnp.bfloat16) for f in fake_feats_gen]
    bf_dict = {"real_feats_gen": real_bf, "fake_feats_gen": fake_bf}
    got = jax.block_until_ready(LossWrapper("l1", 10.0)(bf_dict, {})["G_FM"])
    want = ref_loss(fake_bf, real_bf, "l1")
    assert jnp.allclose(got, want, rtol=1e-3, atol=1e-3), (got, want)

    # 4) Multi-block + partial-last-block masking path (tiny block budget:
    #    100 rows, tile 32 -> 4 blocks, last block has 4 valid rows).
    big_real = [jax.random.normal(ks[0], (2, 4, 40, 40), dtype=jnp.float32)]
    big_fake = [jax.random.normal(ks[3], (2, 4, 40, 40), dtype=jnp.float32)]
    got = jax.block_until_ready(
        feature_matching_loss(big_fake, big_real, loss_type="l1",
                              block_bytes=32 * _LANES * 4))
    want = jnp.mean(jnp.abs(big_fake[0] - big_real[0]))
    assert jnp.allclose(got, want, rtol=1e-4, atol=1e-5), (got, want)

    print("KERNEL_OK")
</pallas_src>

<mosaic_0001>
module attributes {stable_mosaic.version = 11 : i64} {
  func.func @_fm_partial_kernel(%arg0: i32, %arg1: memref<16x128xf32, #tpu.memory_space<vmem>>, %arg2: memref<16x128xf32, #tpu.memory_space<vmem>>, %arg3: memref<1x8x128xf32, #tpu.memory_space<vmem>>) attributes {dimension_semantics = [#tpu.dimension_semantics<parallel>], iteration_bounds = array<i64: 1>, scalar_prefetch = 0 : i64, scratch_operands = 0 : i64, tpu.core_type = #tpu.core_type<tc>, window_params = [{transform_indices = @transform_0, window_bounds = array<i64: 16, 128>}, {transform_indices = @transform_1, window_bounds = array<i64: 16, 128>}, {transform_indices = @transform_2, window_bounds = array<i64: 1, 8, 128>}]} {
    %c0 = arith.constant 0 : index
    %c0_0 = arith.constant 0 : index
    %0 = vector.load %arg1[%c0, %c0_0] : memref<16x128xf32, #tpu.memory_space<vmem>>, vector<16x128xf32>
    %c0_1 = arith.constant 0 : index
    %c0_2 = arith.constant 0 : index
    %1 = vector.load %arg2[%c0_1, %c0_2] : memref<16x128xf32, #tpu.memory_space<vmem>>, vector<16x128xf32>
    %2 = arith.subf %0, %1 : vector<16x128xf32>
    %3 = math.absf %2 : vector<16x128xf32>
    %4 = vector.shape_cast %3 : vector<16x128xf32> to vector<2x1x8x128xf32>
    %cst = arith.constant dense<0.000000e+00> : vector<2x8x128xf32>
    %5 = vector.multi_reduction <add>, %4, %cst [1] : vector<2x1x8x128xf32> to vector<2x8x128xf32>
    %cst_3 = arith.constant dense<0.000000e+00> : vector<8x128xf32>
    %6 = vector.multi_reduction <add>, %5, %cst_3 [0] : vector<2x8x128xf32> to vector<8x128xf32>
    %7 = vector.shape_cast %6 : vector<8x128xf32> to vector<1x8x128xf32>
    %c0_4 = arith.constant 0 : index
    %c0_5 = arith.constant 0 : index
    %c0_6 = arith.constant 0 : index
    %8 = vector.load %arg3[%c0_4, %c0_5, %c0_6] : memref<1x8x128xf32, #tpu.memory_space<vmem>>, vector<1x8x128xf32>
    tpu.vector_store %arg3[%c0_4, %c0_5, %c0_6], %7 {strides = array<i32>} : memref<1x8x128xf32, #tpu.memory_space<vmem>>, vector<1x8x128xf32>,
    return
  }
  func.func @transform_0(%arg0: i32) -> (i32, i32) {
    %c0_i32 = arith.constant 0 : i32
    %c0_i32_0 = arith.constant 0 : i32
    return %arg0, %c0_i32 : i32, i32
  }
  func.func @transform_1(%arg0: i32) -> (i32, i32) {
    %c0_i32 = arith.constant 0 : i32
    %c0_i32_0 = arith.constant 0 : i32
    return %arg0, %c0_i32 : i32, i32
  }
  func.func @transform_2(%arg0: i32) -> (i32, i32, i32) {
    %c0_i32 = arith.constant 0 : i32
    %c0_i32_0 = arith.constant 0 : i32
    %c0_i32_1 = arith.constant 0 : i32
    return %arg0, %c0_i32, %c0_i32_0 : i32, i32, i32
  }
}

</mosaic_0001>

<llo_original>
// kernel: tpu_custom_call.1
$region0: #{tpu_custom_call.1}
  #allocation0 [shape = 'u32[]', space=smem, size = 0x4, offset = 0x4, fixed_abs, tag = 'smem constant byte address 0x4 - core index']
  #allocation1 [shape = 'u32[72,128]{1,0:T(1,128)}', space=vmem, size = 0x9000, scoped, tag = 'internal scratch']
  %s0 = inlined_call_operand.hbm [shape: f32[16,128], index: 0, kind: input, shape index: {}]
  %s1 = inlined_call_operand.hbm [shape: f32[16,128], index: 1, kind: input, shape index: {}]
  %s2 = inlined_call_operand.hbm [shape: f32[1,8,128], index: 2, kind: output, shape index: {}]
  %s3 = sld [smem:[#allocation0]]
  $region26: #{tpu_custom_call.1} parent=0
    _
  %s5 = ssub.s32 1, %s3
  %s6 = scalar_select 0, %s5, %s3
  $region1: #{tpu_custom_call.1} parent=0
    #allocation2 [shape = 'u8[8192]{0}', space=vmem, size = 0x2000, scoped, tag = 'input window, operand 0, single buffered']
    #allocation3 [shape = 's32[1]{0}', space=sflag, size = 0x4, scoped, tag = 'scoped memory for tpu_custom_call.1']
    #allocation4 [shape = 's32[1]{0}', space=sflag, size = 0x4, scoped, tag = 'scoped memory for tpu_custom_call.1']
    #allocation5 [shape = 'u8[8192]{0}', space=vmem, size = 0x2000, scoped, tag = 'input window, operand 1, single buffered']
    #allocation6 [shape = 's32[1]{0}', space=sflag, size = 0x4, scoped, tag = 'scoped memory for tpu_custom_call.1']
    #allocation7 [shape = 'u8[4096]{0}', space=vmem, size = 0x1000, scoped, tag = 'output window, operand 0, single buffered']
    %7 = vsyncpa [#allocation3], 0
    %8 = vsyncpa [#allocation6], 0
    %9 = vsyncpa [#allocation4], 0
    // Predicated region
    $region2: #{tpu_custom_call.1} parent=1 // pred_check
      _
    $region3: #{tpu_custom_call.1} parent=1 // pred_check_branch
      %11 = sbr.rel (0) target = $region5
    $region4: #{tpu_custom_call.1} parent=1 // pred_region
      %13 = vsyncadd [#allocation3], 0
      %s14 = sshll.u32 %s0, 4
      %s15 = int_to_ptr.hbm [resolvable:$true] %s14
      %s16 = sshll.u32 [#allocation2], 4
      %s17 = int_to_ptr.vmem [resolvable:$true] %s16
      %22 = dma.hbm_to_vmem [thread:$0]  %s15, 256, %s17, [#allocation3], 128, 128, 8
    $region5: #{tpu_custom_call.1} parent=1 // pred_fallthru
      _
    // Predicated region
    $region6: #{tpu_custom_call.1} parent=1 // pred_check
      _
    $region7: #{tpu_custom_call.1} parent=1 // pred_check_branch
      %24 = sbr.rel (0) target = $region9
    $region8: #{tpu_custom_call.1} parent=1 // pred_region
      %26 = vsyncadd [#allocation6], 0
      %s27 = sshll.u32 %s1, 4
      %s28 = int_to_ptr.hbm [resolvable:$true] %s27
      %s29 = sshll.u32 [#allocation5], 4
      %s30 = int_to_ptr.vmem [resolvable:$true] %s29
      %35 = dma.hbm_to_vmem [thread:$0]  %s28, 256, %s30, [#allocation6], 128, 128, 8
    $region9: #{tpu_custom_call.1} parent=1 // pred_fallthru
      _
    // Predicated region
    $region10: #{tpu_custom_call.1} parent=1 // pred_check
      _
    $region11: #{tpu_custom_call.1} parent=1 // pred_check_branch
      %37 = sbr.rel (0) target = $region13
    $region12: #{tpu_custom_call.1} parent=1 // pred_region
      %39 = dma.done [#allocation3], 256
    $region13: #{tpu_custom_call.1} parent=1 // pred_fallthru
      _
    // Predicated region
    $region14: #{tpu_custom_call.1} parent=1 // pred_check
      _
    $region15: #{tpu_custom_call.1} parent=1 // pred_check_branch
      %41 = sbr.rel (0) target = $region17
    $region16: #{tpu_custom_call.1} parent=1 // pred_region
      %43 = dma.done [#allocation6], 256
    $region17: #{tpu_custom_call.1} parent=1 // pred_fallthru
      _
    %v44 = vld [vmem:[#allocation2] sm:$0xff]
    %v45 = vld [vmem:[#allocation2 + $0x8] sm:$0xff]
    %v46 = vld [vmem:[#allocation5] sm:$0xff]
    %v47 = vld [vmem:[#allocation5 + $0x8] sm:$0xff]
    %v48 = vsub.f32 %v44, %v46
    %v49 = vsub.f32 %v45, %v47
    %v50 = vand.u32 2147483647, %v48
    %v51 = vand.u32 2147483647, %v49
    %v52 = vadd.f32 %v50, 0.0
    %v53 = vadd.f32 %v51, 0.0
    %v54 = vadd.f32 %v52, %v53
    %55 = vst [vmem:[#allocation7] sm:$0xff] %v54
    // Predicated region
    $region18: #{tpu_custom_call.1} parent=1 // pred_check
      _
    $region19: #{tpu_custom_call.1} parent=1 // pred_check_branch
      %57 = sbr.rel (0) target = $region21
    $region20: #{tpu_custom_call.1} parent=1 // pred_region
      %59 = vsyncadd [#allocation4], 0
      %s61 = sshll.u32 [#allocation7], 4
      %s62 = int_to_ptr.vmem [resolvable:$true] %s61
      %s63 = sshll.u32 %s2, 4
      %s64 = int_to_ptr.hbm [resolvable:$true] %s63
      %66 = dma.vmem_to_hbm [thread:$0]  %s62, 128, %s64, [#allocation4]
    $region21: #{tpu_custom_call.1} parent=1 // pred_fallthru
      _
    // Predicated region
    $region22: #{tpu_custom_call.1} parent=1 // pred_check
      _
    $region23: #{tpu_custom_call.1} parent=1 // pred_check_branch
      %68 = sbr.rel (0) target = $region25
    $region24: #{tpu_custom_call.1} parent=1 // pred_region
      %70 = dma.done [#allocation4], 128
    $region25: #{tpu_custom_call.1} parent=1 // pred_fallthru
      _
    %71 = vsyncpa [#allocation3], 1
    %72 = vsyncpa [#allocation6], 1
    %73 = vsyncpa [#allocation4], 1

</llo_original>
